<compile_context>
chip_gen: v7x
topology: tpu7x:2x2x1
jax: 0.10.0
libtpu: 0.0.40
codegen_flags: <defaults>
</compile_context>

<pallas_src>
import jax
import jax.numpy as jnp
import numpy as np
from jax.experimental import pallas as pl
from jax.experimental.pallas import tpu as pltpu


def _lora_kernel(x_ref, a_ref, bt_ref, o_ref):
    # x_ref : (tile_m, in)       stored dtype (cast per-tile below)
    # a_ref : (rank, in)         compute dtype
    # bt_ref: (rank, out_pad)    compute dtype, pre-scaled by alpha/rank
    # o_ref : (tile_m, out_pad)  output dtype
    x = x_ref[...].astype(a_ref.dtype)
    # Contract over in_features directly (no explicit A transpose in-kernel).
    xa = jax.lax.dot_general(
        x, a_ref[...],
        dimension_numbers=(((1,), (1,)), ((), ())),
        preferred_element_type=jnp.float32)
    y = jnp.dot(xa.astype(bt_ref.dtype), bt_ref[...],
                preferred_element_type=jnp.float32)
    o_ref[...] = y.astype(o_ref.dtype)


def _lora_add_kernel(x_ref, a_ref, bt_ref, base_ref, o_ref):
    # Same as _lora_kernel plus fused residual add with the aliased base output.
    x = x_ref[...].astype(a_ref.dtype)
    xa = jax.lax.dot_general(
        x, a_ref[...],
        dimension_numbers=(((1,), (1,)), ((), ())),
        preferred_element_type=jnp.float32)
    y = jnp.dot(xa.astype(bt_ref.dtype), bt_ref[...],
                preferred_element_type=jnp.float32)
    o_ref[...] = (base_ref[...].astype(jnp.float32) + y).astype(o_ref.dtype)


def _cdiv(a, b):
    return -(-a // b)


def _round_up(v, mult):
    return _cdiv(v, mult) * mult


def _vmem_capacity_bytes():
    try:
        info = pltpu.get_tpu_info()
        cap = getattr(info, "vmem_capacity_bytes", None)
        if cap:
            return int(cap)
    except Exception:
        pass
    return 64 << 20   # conservative default: v7x per-TC VMEM


def lora_linear(x, lora_a_weight, lora_b_weight, *, alpha=1.0,
                base_out=None, tile_m=None, compute_dtype=None):
    """LoRA linear: (x @ A^T) @ B^T * (alpha / rank), optionally + base_out.

    x              : (..., in_features), any float dtype (stays in HBM as-is)
    lora_a_weight  : (rank, in_features)
    lora_b_weight  : (out_features, rank)
    base_out       : optional (..., out_features) frozen base-linear output,
                     fused add in-kernel via input/output aliasing.
    compute_dtype  : MXU operand dtype (e.g. jnp.bfloat16); accumulation is
                     always f32, output keeps x.dtype.
    """
    rank, in_features = lora_a_weight.shape
    out_features = lora_b_weight.shape[0]
    scaling = alpha / rank

    out_dtype = x.dtype
    if compute_dtype is None:
        compute_dtype = x.dtype
    compute_dtype = jnp.dtype(compute_dtype)

    lead_shape = x.shape[:-1]
    m = 1
    for d in lead_shape:
        m *= d
    x2d = x.reshape(m, in_features)                  # no wrapper-side dtype cast

    # Lane-dense output width (multiple of 128) -> unmasked stores in-kernel.
    out_pad = _round_up(out_features, 128)

    # B^T (rank, out_pad), pre-scaled by alpha/rank, zero-padded extra lanes.
    b_t = (lora_b_weight.astype(jnp.float32).T
           * jnp.asarray(scaling, jnp.float32)).astype(compute_dtype)
    if out_pad != out_features:
        b_t = jnp.pad(b_t, ((0, 0), (0, out_pad - out_features)))
    a_w = lora_a_weight.astype(compute_dtype)

    fuse_base = base_out is not None
    if fuse_base:
        base2d = base_out.reshape(m, out_features).astype(out_dtype)
        if out_pad != out_features:
            base2d = jnp.pad(base2d, ((0, 0), (0, out_pad - out_features)))

    x_bytes = jnp.dtype(x2d.dtype).itemsize
    out_bytes = jnp.dtype(out_dtype).itemsize
    w_bytes = compute_dtype.itemsize
    # Sublane alignment of the row tile (8 rows f32, 16 bf16, ...).
    row_align = max(8, 32 // x_bytes, 32 // out_bytes)

    vmem_cap = _vmem_capacity_bytes()
    large_vmem = vmem_cap >= (96 << 20)              # v5e/v6e: 128 MiB; v7x: 64 MiB

    # VMEM bytes per row of the tile: double-buffered x and y tiles, the live
    # f32 accumulator of the second matmul, the (tile_m, rank) f32 intermediate
    # and (if fused) the double-buffered base tile.
    per_row = (2 * in_features * x_bytes
               + 2 * out_pad * out_bytes
               + out_pad * 4
               + rank * 4)
    if fuse_base:
        per_row += 2 * out_pad * out_bytes
    # Weights are double-buffered by the pipeline even with constant index maps.
    # TODO(synk): single-buffer them with pl.BlockSpec(pipeline_mode=pl.Buffered(1))
    # once verified on the target JAX version (matters for rank >= 64).
    weight_vmem = 2 * rank * (in_features + out_pad) * w_bytes

    if tile_m is None:
        budget = ((56 << 20) if large_vmem else (26 << 20)) - weight_vmem
        budget = max(budget, row_align * per_row)
        max_rows = 2048 if large_vmem else 1024
        tile_m = max(row_align, min(budget // max(per_row, 1), max_rows))
        # Keep >=2 (up to 4) row blocks when m permits: shards across v7x's two
        # TensorCores and keeps the prefetch/compute/writeback pipeline busy.
        target_blocks = min(4, _cdiv(m, row_align))
        if target_blocks > 1:
            tile_m = min(tile_m, _cdiv(m, target_blocks))
    tile_m = _round_up(tile_m, row_align)
    tile_m = min(tile_m, _round_up(m, row_align))    # never exceed the row count

    # No jnp.pad over rows: Pallas masks the ragged tail block (rows independent).
    grid = (_cdiv(m, tile_m),)

    vmem_need = tile_m * per_row + weight_vmem
    # Leave headroom for Mosaic internal scratch; never request all of VMEM
    # (v7x per-TC VMEM is only 64 MiB).
    limit_cap = min((vmem_cap * 7) // 8, 112 << 20)
    vmem_limit = int(min(max(vmem_need + (8 << 20), 32 << 20), limit_cap))

    cost = pl.CostEstimate(
        flops=2 * m * rank * (in_features + out_pad),
        transcendentals=0,
        bytes_accessed=(m * in_features * x_bytes
                        + (2 if fuse_base else 1) * m * out_pad * out_bytes
                        + rank * (in_features + out_pad) * w_bytes),
    )

    in_specs = [
        pl.BlockSpec((tile_m, in_features), lambda i: (i, 0)),
        pl.BlockSpec((rank, in_features), lambda i: (0, 0)),
        pl.BlockSpec((rank, out_pad), lambda i: (0, 0)),
    ]
    inputs = [x2d, a_w, b_t]
    io_aliases = {}
    kernel = _lora_kernel
    if fuse_base:
        in_specs.append(pl.BlockSpec((tile_m, out_pad), lambda i: (i, 0)))
        inputs.append(base2d)
        io_aliases = {3: 0}                          # base buffer aliases the output
        kernel = _lora_add_kernel

    out2d = pl.pallas_call(
        kernel,
        out_shape=jax.ShapeDtypeStruct((m, out_pad), out_dtype),
        grid_spec=pltpu.PrefetchScalarGridSpec(
            num_scalar_prefetch=0,
            grid=grid,
            in_specs=in_specs,
            out_specs=pl.BlockSpec((tile_m, out_pad), lambda i: (i, 0)),
        ),
        compiler_params=pltpu.CompilerParams(
            dimension_semantics=("parallel",),       # row tiles shard across v7x TCs
            vmem_limit_bytes=vmem_limit,
        ),
        cost_estimate=cost,
        input_output_aliases=io_aliases,
    )(*inputs)

    if out_pad != out_features:
        # TODO(synk): fusing the LoRA delta into the base linear's lane-dense
        # output slab avoids both this slice pass and any masked-store penalty.
        out2d = out2d[:, :out_features]
    return out2d.reshape(*lead_shape, out_features)


if __name__ == "__main__":
    # Module hyperparameters (small, consistent with the forward pass)
    in_features = 32
    out_features = 32
    rank = 4
    alpha = 1.0
    batch, seq = 2, 8

    key = jax.random.PRNGKey(0)
    k_x, k_a, k_b, k_base = jax.random.split(key, 4)

    # deterministic synthetic parameters (nn.Linear weight shape = (out, in))
    lora_a_weight = jax.random.normal(k_a, (rank, in_features), jnp.float32) * 0.02
    lora_b_weight = jax.random.normal(k_b, (out_features, rank), jnp.float32) * 0.02
    x = jax.random.normal(k_x, (batch, seq, in_features), jnp.float32)

    # float64 host reference (exact module semantics)
    scaling = alpha / rank
    x64 = np.asarray(x, np.float64)
    a64 = np.asarray(lora_a_weight, np.float64)
    b64 = np.asarray(lora_b_weight, np.float64)
    y_ref = (x64 @ a64.T) @ b64.T * scaling

    # f32 path
    y = jax.block_until_ready(lora_linear(x, lora_a_weight, lora_b_weight, alpha=alpha))
    assert y.shape == (batch, seq, out_features)
    assert np.allclose(np.asarray(y, np.float64), y_ref, atol=2e-5, rtol=5e-3)

    # bf16 MXU-operand path (x stays f32 in HBM, cast per-tile in-kernel)
    y_bf16 = jax.block_until_ready(
        lora_linear(x, lora_a_weight, lora_b_weight, alpha=alpha,
                    compute_dtype=jnp.bfloat16))
    assert y_bf16.shape == (batch, seq, out_features)
    assert np.allclose(np.asarray(y_bf16, np.float64), y_ref, atol=5e-3, rtol=5e-2)

    # fused residual-add path (base-linear output aliased into the kernel output)
    base = jax.random.normal(k_base, (batch, seq, out_features), jnp.float32)
    fused_fn = jax.jit(lambda x_, a_, b_, r_: lora_linear(
        x_, a_, b_, alpha=alpha, base_out=r_))
    y_fused = jax.block_until_ready(fused_fn(x, lora_a_weight, lora_b_weight, base))
    assert y_fused.shape == (batch, seq, out_features)
    assert np.allclose(np.asarray(y_fused, np.float64),
                       y_ref + np.asarray(base, np.float64), atol=2e-5, rtol=5e-3)

    print("KERNEL_OK")
</pallas_src>

<mosaic_0001>
module attributes {stable_mosaic.version = 11 : i64} {
  func.func @_lora_kernel(%arg0: i32, %arg1: memref<8x32xf32, #tpu.memory_space<vmem>>, %arg2: memref<4x32xf32, #tpu.memory_space<vmem>>, %arg3: memref<4x128xf32, #tpu.memory_space<vmem>>, %arg4: memref<8x128xf32, #tpu.memory_space<vmem>>) attributes {dimension_semantics = [#tpu.dimension_semantics<parallel>], iteration_bounds = array<i64: 2>, scalar_prefetch = 0 : i64, scratch_operands = 0 : i64, tpu.core_type = #tpu.core_type<tc>, window_params = [{transform_indices = @transform_0, window_bounds = array<i64: 8, 32>}, {pipeline_mode = #tpu.pipeline_mode<synchronous>, transform_indices = @transform_1, window_bounds = array<i64: 4, 32>}, {pipeline_mode = #tpu.pipeline_mode<synchronous>, transform_indices = @transform_2, window_bounds = array<i64: 4, 128>}, {transform_indices = @transform_3, window_bounds = array<i64: 8, 128>}]} {
    %c0 = arith.constant 0 : index
    %c0_0 = arith.constant 0 : index
    %0 = vector.load %arg1[%c0, %c0_0] : memref<8x32xf32, #tpu.memory_space<vmem>>, vector<8x32xf32>
    %c0_1 = arith.constant 0 : index
    %c0_2 = arith.constant 0 : index
    %1 = vector.load %arg2[%c0_1, %c0_2] : memref<4x32xf32, #tpu.memory_space<vmem>>, vector<4x32xf32>
    %cst = arith.constant dense<0.000000e+00> : vector<8x4xf32>
    %2 = tpu.matmul %0, %1, %cst {dimension_numbers = #tpu.dot_dimension_numbers<[1], [1], [0], [0], [0, 0, 1, 0], [], []>} : vector<8x32xf32>, vector<4x32xf32>, vector<8x4xf32> -> vector<8x4xf32>
    %c0_3 = arith.constant 0 : index
    %c0_4 = arith.constant 0 : index
    %3 = vector.load %arg3[%c0_3, %c0_4] : memref<4x128xf32, #tpu.memory_space<vmem>>, vector<4x128xf32>
    %cst_5 = arith.constant dense<0.000000e+00> : vector<8x128xf32>
    %4 = tpu.matmul %2, %3, %cst_5 {dimension_numbers = #tpu.dot_dimension_numbers<[1], [0], [0], [1], [0, 0, 1, 1], [], []>} : vector<8x4xf32>, vector<4x128xf32>, vector<8x128xf32> -> vector<8x128xf32>
    %c0_6 = arith.constant 0 : index
    %c0_7 = arith.constant 0 : index
    %5 = vector.load %arg4[%c0_6, %c0_7] : memref<8x128xf32, #tpu.memory_space<vmem>>, vector<8x128xf32>
    tpu.vector_store %arg4[%c0_6, %c0_7], %4 {strides = array<i32>} : memref<8x128xf32, #tpu.memory_space<vmem>>, vector<8x128xf32>,
    return
  }
  func.func @transform_0(%arg0: i32) -> (i32, i32) {
    %c0_i32 = arith.constant 0 : i32
    %c0_i32_0 = arith.constant 0 : i32
    return %arg0, %c0_i32 : i32, i32
  }
  func.func @transform_1(%arg0: i32) -> (i32, i32) {
    %c0_i32 = arith.constant 0 : i32
    %c0_i32_0 = arith.constant 0 : i32
    %c0_i32_1 = arith.constant 0 : i32
    return %c0_i32, %c0_i32_0 : i32, i32
  }
  func.func @transform_2(%arg0: i32) -> (i32, i32) {
    %c0_i32 = arith.constant 0 : i32
    %c0_i32_0 = arith.constant 0 : i32
    %c0_i32_1 = arith.constant 0 : i32
    return %c0_i32, %c0_i32_0 : i32, i32
  }
  func.func @transform_3(%arg0: i32) -> (i32, i32) {
    %c0_i32 = arith.constant 0 : i32
    %c0_i32_0 = arith.constant 0 : i32
    return %arg0, %c0_i32 : i32, i32
  }
}

</mosaic_0001>

<llo_original>
// kernel: tpu_custom_call.1
$region0: #{tpu_custom_call.1}
  #allocation0 [shape = 'u32[]', space=smem, size = 0x4, offset = 0x4, fixed_abs, tag = 'smem constant byte address 0x4 - core index']
  #allocation1 [shape = 'u32[144,128]{1,0:T(1,128)}', space=vmem, size = 0x12000, scoped, tag = 'internal scratch']
  %s0 = inlined_call_operand.hbm [shape: f32[16,32], index: 0, kind: input, shape index: {}]
  %s1 = inlined_call_operand.hbm [shape: f32[4,32], index: 1, kind: input, shape index: {}]
  %s2 = inlined_call_operand.vmem [shape: f32[4,128], index: 2, kind: input, shape index: {}]
  %s3 = inlined_call_operand.hbm [shape: f32[16,128], index: 3, kind: output, shape index: {}]
  %s4 = sld [smem:[#allocation0]]
  $region53: #{tpu_custom_call.1} parent=0
    _
  %s6 = ssub.s32 1, %s4
  %s7 = scalar_select 0, %s6, %s4
  $region1: #{tpu_custom_call.1} parent=0
    #allocation2 [shape = 'u8[8192]{0}', space=vmem, size = 0x2000, scoped, tag = 'input window, operand 0']
    #allocation3 [shape = 's32[2]{0}', space=sflag, size = 0x8, scoped, tag = 'scoped memory for tpu_custom_call.1']
    #allocation4 [shape = 's32[2]{0}', space=sflag, size = 0x8, scoped, tag = 'scoped memory for tpu_custom_call.1']
    #allocation5 [shape = 'u8[2048]{0}', space=vmem, size = 0x800, scoped, tag = 'input window, operand 1, single buffered']
    #allocation6 [shape = 's32[1]{0}', space=sflag, size = 0x4, scoped, tag = 'scoped memory for tpu_custom_call.1']
    #allocation7 [shape = 'u8[8192]{0}', space=vmem, size = 0x2000, scoped, tag = 'output window, operand 0']
    %8 = vsyncpa [#allocation3], 0
    %s9 = scalar_lea.sflag [#allocation3], 1
    %10 = vsyncpa %s9, 0
    %11 = vsyncpa [#allocation6], 0
    %12 = vsyncpa [#allocation4], 0
    %s13 = scalar_lea.sflag [#allocation4], 1
    %14 = vsyncpa %s13, 0
    loop: start=0, step=1, limit=4
    $region2: #{tpu_custom_call.1} parent=1 // loop_pre_header
      _
    $region3: #{tpu_custom_call.1} parent=1 // loop_header
      %s16 = sphi 0, %s20
      %p17 = scmp.ge.s32.totalorder %s16, 4
      %s26 = sphi 0, %s28
      %s29 = sphi 0, %s26
      %s30 = sphi 0, %s29
      %s46 = sphi 0, %s30
      %s50 = sphi 0, %s50
      %s52 = sphi 0, %s50
      %s53 = sphi 0, %s52
      %s67 = sphi 0, %s53
      %s71 = sphi 0, %s71
      %s73 = sphi 0, %s71
      %s74 = sphi 0, %s73
      %s88 = sphi 0, %s74
      %s94 = sphi 0, %s96
      %s97 = sphi 0, %s94
      %s98 = sphi 0, %s97
      %s114 = sphi 0, %s98
    $region4: #{tpu_custom_call.1} parent=1 // loop_header_branch
      %19 = sbr.rel (%p17) target = $region8
    $region5: #{tpu_custom_call.1} parent=1 // loop_body
      %s21 = ssub.s32 %s16, 1
      %s22 = ssub.s32 %s16, 2
      %s23 = sadd.s32 %s16, 1
      %s24 = ssub.s32 %s16, %s23
      %p25 = scmp.eq.s32.totalorder %s24, 0
      %s27 = sadd.s32 %s26, 1
      %s28 = scalar_select %p25, %s26, %s27
      %p31 = pneg %p25
      %p32 = scmp.eq.s32.totalorder %s16, 1
      %p33 = por %p31, %p32
      %p34 = scmp.ne.s32.totalorder %s26, %s29
      %p35 = scmp.eq.s32.totalorder %s16, 0
      %p36 = por %p34, %p35
      %p37 = scmp.ne.s32.totalorder %s26, %s29
      %p38 = scmp.eq.s32.totalorder %s21, 1
      %p39 = por %p37, %p38
      %p40 = scmp.ne.s32.totalorder %s29, %s30
      %p41 = scmp.eq.s32.totalorder %s21, 0
      %p42 = por %p40, %p41
      %p43 = scmp.ne.s32.totalorder %s29, %s30
      %p44 = scmp.eq.s32.totalorder %s22, 1
      %p45 = por %p43, %p44
      %p47 = scmp.ne.s32.totalorder %s30, %s46
      %p48 = scmp.eq.s32.totalorder %s22, 0
      %p49 = por %p47, %p48
      %s51 = sadd.s32 %s50, 1
      %p54 = scmp.eq.s32.totalorder %s16, 1
      %p55 = scmp.ne.s32.totalorder %s50, %s52
      %p56 = scmp.eq.s32.totalorder %s16, 0
      %p57 = por %p55, %p56
      %p58 = scmp.ne.s32.totalorder %s50, %s52
      %p59 = scmp.eq.s32.totalorder %s21, 1
      %p60 = por %p58, %p59
      %p61 = scmp.ne.s32.totalorder %s52, %s53
      %p62 = scmp.eq.s32.totalorder %s21, 0
      %p63 = por %p61, %p62
      %p64 = scmp.ne.s32.totalorder %s52, %s53
      %p65 = scmp.eq.s32.totalorder %s22, 1
      %p66 = por %p64, %p65
      %p68 = scmp.ne.s32.totalorder %s53, %s67
      %p69 = scmp.eq.s32.totalorder %s22, 0
      %p70 = por %p68, %p69
      %s72 = sadd.s32 %s71, 1
      %p75 = scmp.eq.s32.totalorder %s16, 1
      %p76 = scmp.ne.s32.totalorder %s71, %s73
      %p77 = scmp.eq.s32.totalorder %s16, 0
      %p78 = por %p76, %p77
      %p79 = scmp.ne.s32.totalorder %s71, %s73
      %p80 = scmp.eq.s32.totalorder %s21, 1
      %p81 = por %p79, %p80
      %p82 = scmp.ne.s32.totalorder %s73, %s74
      %p83 = scmp.eq.s32.totalorder %s21, 0
      %p84 = por %p82, %p83
      %p85 = scmp.ne.s32.totalorder %s73, %s74
      %p86 = scmp.eq.s32.totalorder %s22, 1
      %p87 = por %p85, %p86
      %p89 = scmp.ne.s32.totalorder %s74, %s88
      %p90 = scmp.eq.s32.totalorder %s22, 0
      %p91 = por %p89, %p90
      %s92 = ssub.s32 %s16, %s23
      %p93 = scmp.eq.s32.totalorder %s92, 0
      %s95 = sadd.s32 %s94, 1
      %s96 = scalar_select %p93, %s94, %s95
      %p99 = pneg %p93
      %p100 = scmp.eq.s32.totalorder %s16, 1
      %p101 = por %p99, %p100
      %p102 = scmp.ne.s32.totalorder %s94, %s97
      %p103 = scmp.eq.s32.totalorder %s16, 0
      %p104 = por %p102, %p103
      %p105 = scmp.ne.s32.totalorder %s94, %s97
      %p106 = scmp.eq.s32.totalorder %s21, 1
      %p107 = por %p105, %p106
      %p108 = scmp.ne.s32.totalorder %s97, %s98
      %p109 = scmp.eq.s32.totalorder %s21, 0
      %p110 = por %p108, %p109
      %p111 = scmp.ne.s32.totalorder %s97, %s98
      %p112 = scmp.eq.s32.totalorder %s22, 1
      %p113 = por %p111, %p112
      %p115 = scmp.ne.s32.totalorder %s98, %s114
      %p116 = scmp.eq.s32.totalorder %s22, 0
      %p117 = por %p115, %p116
      %p118 = scmp.le.s32.totalorder 1, %s16
      %p119 = scmp.lt.s32.totalorder %s16, 3
      %p120 = pnand %p118, %p119
      %p121 = pneg %p120
      // Predicated region
      $region9: #{tpu_custom_call.1} parent=5 // pred_check
        _
      $region10: #{tpu_custom_call.1} parent=5 // pred_check_branch
        %123 = sbr.rel (%p120) target = $region12
      $region11: #{tpu_custom_call.1} parent=5 // pred_region
        %s124 = ssub.s32 %s16, 1
        // Predicated region
        $region13: #{tpu_custom_call.1} parent=11 // pred_check
          %p125 = pneg %p63
        $region14: #{tpu_custom_call.1} parent=11 // pred_check_branch
          %127 = sbr.rel (%p125) target = $region16
        $region15: #{tpu_custom_call.1} parent=11 // pred_region
          %s129 = ssub.s32 64, 64
          %130 = vsyncadd [#allocation6], %s129
          %s132 = sshll.u32 [#allocation5], 4
          %s133 = int_to_ptr.vmem [resolvable:$true] %s132
          %135 = dma.hbm_to_vmem [thread:$0]  %s1, 64, %s133, [#allocation6]
        $region16: #{tpu_custom_call.1} parent=11 // pred_fallthru
          _
        // Predicated region
        $region17: #{tpu_custom_call.1} parent=11 // pred_check
          %p136 = pneg %p84
        $region18: #{tpu_custom_call.1} parent=11 // pred_check_branch
          %138 = sbr.rel (%p136) target = $region20
        $region19: #{tpu_custom_call.1} parent=11 // pred_region
          _
        $region20: #{tpu_custom_call.1} parent=11 // pred_fallthru
          _
      $region12: #{tpu_custom_call.1} parent=5 // pred_fallthru
        _
      %p139 = scmp.lt.s32.totalorder %s16, 2
      // Predicated region
      $region21: #{tpu_custom_call.1} parent=5 // pred_check
        %p140 = pneg %p139
      $region22: #{tpu_custom_call.1} parent=5 // pred_check_branch
        %142 = sbr.rel (%p140) target = $region24
      $region23: #{tpu_custom_call.1} parent=5 // pred_region
        // Predicated region
        $region25: #{tpu_custom_call.1} parent=23 // pred_check
          %p143 = pneg %p36
        $region26: #{tpu_custom_call.1} parent=23 // pred_check_branch
          %145 = sbr.rel (%p143) target = $region28
        $region27: #{tpu_custom_call.1} parent=23 // pred_region
          %s146 = sand.u32 %s26, 1
          %s147 = scalar_lea.sflag [#allocation3], %s146
          %s148 = sand.u32 %s26, 1
          %s149 = smul.addr %s148, 8
          %s150 = scalar_lea.vmem [#allocation2], %s149
          %s152 = ssub.s32 128, 128
          %153 = vsyncadd %s147, %s152
          %s154 = smul.addr %s16, 128
          %s155 = scalar_lea.hbm %s0, %s154
          %s157 = sshll.u32 %s150, 4
          %s158 = int_to_ptr.vmem [resolvable:$true] %s157
          %160 = dma.hbm_to_vmem [thread:$0]  %s155, 128, %s158, %s147
        $region28: #{tpu_custom_call.1} parent=23 // pred_fallthru
          _
      $region24: #{tpu_custom_call.1} parent=5 // pred_fallthru
        _
      %p161 = scmp.le.s32.totalorder 1, %s16
      %p162 = scmp.lt.s32.totalorder %s16, 3
      %p163 = pnand %p161, %p162
      %p164 = pneg %p163
      // Predicated region
      $region29: #{tpu_custom_call.1} parent=5 // pred_check
        _
      $region30: #{tpu_custom_call.1} parent=5 // pred_check_branch
        %166 = sbr.rel (%p163) target = $region32
      $region31: #{tpu_custom_call.1} parent=5 // pred_region
        %s167 = ssub.s32 %s16, 1
        %s168 = sand.u32 %s29, 1
        %s169 = scalar_lea.sflag [#allocation3], %s168
        %s170 = sand.u32 %s29, 1
        %s171 = smul.addr %s170, 8
        %s172 = scalar_lea.vmem [#allocation2], %s171
        // Predicated region
        $region33: #{tpu_custom_call.1} parent=31 // pred_check
          %p173 = pneg %p42
        $region34: #{tpu_custom_call.1} parent=31 // pred_check_branch
          %175 = sbr.rel (%p173) target = $region36
        $region35: #{tpu_custom_call.1} parent=31 // pred_region
          %176 = dma.done %s169, 128
        $region36: #{tpu_custom_call.1} parent=31 // pred_fallthru
          _
        // Predicated region
        $region37: #{tpu_custom_call.1} parent=31 // pred_check
          %p177 = pneg %p63
        $region38: #{tpu_custom_call.1} parent=31 // pred_check_branch
          %179 = sbr.rel (%p177) target = $region40
        $region39: #{tpu_custom_call.1} parent=31 // pred_region
          %180 = dma.done [#allocation6], 64
        $region40: #{tpu_custom_call.1} parent=31 // pred_fallthru
          _
        %s181 = sand.u32 %s29, 1
        %s182 = scalar_lea.sflag [#allocation3], %s181
        %s183 = sand.u32 %s29, 1
        %s184 = smul.addr %s183, 8
        %s185 = scalar_lea.vmem [#allocation2], %s184
        %p186 = pneg %p42
        %p187 = pneg %p39
        %p188 = pneg %p63
        %p189 = pneg %p60
        %p190 = pneg %p84
        %p191 = pneg %p81
        %p192 = pneg %p110
        %p193 = pneg %p107
        %s194 = sand.u32 %s97, 1
        %s195 = scalar_lea.sflag [#allocation4], %s194
        %s196 = sand.u32 %s97, 1
        %s197 = smul.addr %s196, 8
        %s198 = scalar_lea.vmem [#allocation7], %s197
        %v199 = vld [vmem:[%s172] sm:$0xff]
        %v200 = vld [vmem:[#allocation5] sm:$0xf]
        %vm201 = vcmask 261120
        %v203 = vsel %vm201, %v199, 0
        %v206 = vsel %vm201, %v200, 0
        %208 = vmatprep.subr.mxu0 0.0
        %209 = vmatpush1.xpose.msra.mxu0 %v206
        %210 = vmatprep.subr.mxu0 0.0
        %211 = vmatpush1.xpose.msra.mxu0 0.0
        %212 = vmatprep.subr.mxu0 0.0
        %213 = vmatpush1.xpose.msra.mxu0 0.0
        %214 = vmatprep.subr.mxu0 0.0
        %215 = vmatpush1.xpose.msra.mxu0 0.0
        %216 = vmatprep.subr.mxu0 0.0
        %217 = vmatpush1.xpose.msra.mxu0 0.0
        %218 = vmatprep.subr.mxu0 0.0
        %219 = vmatpush1.xpose.msra.mxu0 0.0
        %220 = vmatprep.subr.mxu0 0.0
        %221 = vmatpush1.xpose.msra.mxu0 0.0
        %222 = vmatprep.subr.mxu0 0.0
        %223 = vmatpush1.xpose.msra.mxu0 0.0
        %224 = vmatprep.subr.mxu0 0.0
        %225 = vmatpush1.xpose.msra.mxu0 0.0
        %226 = vmatprep.subr.mxu0 0.0
        %227 = vmatpush1.xpose.msra.mxu0 0.0
        %228 = vmatprep.subr.mxu0 0.0
        %229 = vmatpush1.xpose.msra.mxu0 0.0
        %230 = vmatprep.subr.mxu0 0.0
        %231 = vmatpush1.xpose.msra.mxu0 0.0
        %232 = vmatprep.subr.mxu0 0.0
        %233 = vmatpush1.xpose.msra.mxu0 0.0
        %234 = vmatprep.subr.mxu0 0.0
        %235 = vmatpush1.xpose.msra.mxu0 0.0
        %236 = vmatprep.subr.mxu0 0.0
        %237 = vmatpush1.xpose.msra.mxu0 0.0
        %238 = vmatprep.subr.mxu0 0.0
        %239 = vmatpush1.xpose.msra.mxu0 0.0
        %240 = vmatprep.subr.mxu0 0.0
        %241 = vmatpush1.xpose.msra.mxu0 0.0
        %242 = vmatprep.subr.mxu0 0.0
        %243 = vmatpush1.xpose.msra.mxu0 0.0
        %244 = vmatprep.subr.mxu0 0.0
        %245 = vmatpush1.xpose.msra.mxu0 0.0
        %246 = vmatprep.subr.mxu0 0.0
        %247 = vmatpush1.xpose.msra.mxu0 0.0
        %248 = vmatprep.subr.mxu0 0.0
        %249 = vmatpush1.xpose.msra.mxu0 0.0
        %250 = vmatprep.subr.mxu0 0.0
        %251 = vmatpush1.xpose.msra.mxu0 0.0
        %252 = vmatprep.subr.mxu0 0.0
        %253 = vmatpush1.xpose.msra.mxu0 0.0
        %254 = vmatprep.subr.mxu0 0.0
        %255 = vmatpush1.xpose.msra.mxu0 0.0
        %256 = vmatprep.subr.mxu0 0.0
        %257 = vmatpush1.xpose.msra.mxu0 0.0
        %258 = vmatprep.subr.mxu0 0.0
        %259 = vmatpush1.xpose.msra.mxu0 0.0
        %260 = vmatprep.subr.mxu0 0.0
        %261 = vmatpush1.xpose.msra.mxu0 0.0
        %262 = vmatprep.subr.mxu0 0.0
        %263 = vmatpush1.xpose.msra.mxu0 0.0
        %264 = vmatprep.subr.mxu0 0.0
        %265 = vmatpush1.xpose.msra.mxu0 0.0
        %266 = vmatprep.subr.mxu0 0.0
        %267 = vmatpush1.xpose.msra.mxu0 0.0
        %268 = vmatprep.subr.mxu0 0.0
        %269 = vmatpush1.xpose.msra.mxu0 0.0
        %270 = vmatprep.subr.mxu0 0.0
        %271 = vmatpush1.xpose.msra.mxu0 0.0
        %272 = vmatprep.mubr.f32.mxu0 0.0
        %273 = vmatmul.mubr.f32.gmra.mrb[0].mxu0 %v203
        %v274 = vpop.f32.mrb[0].mxu0
        %v275 = vadd.f32 0.0, %v274
        %v276 = vpop.f32.mrb[0].mxu0
        %277 = vdwg.mxu0
        %v278 = vld [vmem:[%s2] sm:$0xf]
        %vm279 = vcmask 31744
        %v281 = vsel %vm279, %v275, 0
        %vm283 = vcmask 1043456
        %v285 = vsel %vm283, %v278, 0
        %287 = vmatprep.subr.mxu0 0.0
        %288 = vmatpush1.msra.mxu0 %v285
        %289 = vmatprep.subr.mxu0 0.0
        %290 = vmatpush1.msra.mxu0 0.0
        %291 = vmatprep.subr.mxu0 0.0
        %292 = vmatpush1.msra.mxu0 0.0
        %293 = vmatprep.subr.mxu0 0.0
        %294 = vmatpush1.msra.mxu0 0.0
        %295 = vmatprep.subr.mxu0 0.0
        %296 = vmatpush1.msra.mxu0 0.0
        %297 = vmatprep.subr.mxu0 0.0
        %298 = vmatpush1.msra.mxu0 0.0
        %299 = vmatprep.subr.mxu0 0.0
        %300 = vmatpush1.msra.mxu0 0.0
        %301 = vmatprep.subr.mxu0 0.0
        %302 = vmatpush1.msra.mxu0 0.0
        %303 = vmatprep.subr.mxu0 0.0
        %304 = vmatpush1.msra.mxu0 0.0
        %305 = vmatprep.subr.mxu0 0.0
        %306 = vmatpush1.msra.mxu0 0.0
        %307 = vmatprep.subr.mxu0 0.0
        %308 = vmatpush1.msra.mxu0 0.0
        %309 = vmatprep.subr.mxu0 0.0
        %310 = vmatpush1.msra.mxu0 0.0
        %311 = vmatprep.subr.mxu0 0.0
        %312 = vmatpush1.msra.mxu0 0.0
        %313 = vmatprep.subr.mxu0 0.0
        %314 = vmatpush1.msra.mxu0 0.0
        %315 = vmatprep.subr.mxu0 0.0
        %316 = vmatpush1.msra.mxu0 0.0
        %317 = vmatprep.subr.mxu0 0.0
        %318 = vmatpush1.msra.mxu0 0.0
        %319 = vmatprep.subr.mxu0 0.0
        %320 = vmatpush1.msra.mxu0 0.0
        %321 = vmatprep.subr.mxu0 0.0
        %322 = vmatpush1.msra.mxu0 0.0
        %323 = vmatprep.subr.mxu0 0.0
        %324 = vmatpush1.msra.mxu0 0.0
        %325 = vmatprep.subr.mxu0 0.0
        %326 = vmatpush1.msra.mxu0 0.0
        %327 = vmatprep.subr.mxu0 0.0
        %328 = vmatpush1.msra.mxu0 0.0
        %329 = vmatprep.subr.mxu0 0.0
        %330 = vmatpush1.msra.mxu0 0.0
        %331 = vmatprep.subr.mxu0 0.0
        %332 = vmatpush1.msra.mxu0 0.0
        %333 = vmatprep.subr.mxu0 0.0
        %334 = vmatpush1.msra.mxu0 0.0
        %335 = vmatprep.subr.mxu0 0.0
        %336 = vmatpush1.msra.mxu0 0.0
        %337 = vmatprep.subr.mxu0 0.0
        %338 = vmatpush1.msra.mxu0 0.0
        %339 = vmatprep.subr.mxu0 0.0
        %340 = vmatpush1.msra.mxu0 0.0
        %341 = vmatprep.subr.mxu0 0.0
        %342 = vmatpush1.msra.mxu0 0.0
        %343 = vmatprep.subr.mxu0 0.0
        %344 = vmatpush1.msra.mxu0 0.0
        %345 = vmatprep.subr.mxu0 0.0
        %346 = vmatpush1.msra.mxu0 0.0
        %347 = vmatprep.subr.mxu0 0.0
        %348 = vmatpush1.msra.mxu0 0.0
        %349 = vmatprep.subr.mxu0 0.0
        %350 = vmatpush1.msra.mxu0 0.0
        %351 = vmatprep.mubr.f32.mxu0 0.0
        %352 = vmatmul.mubr.f32.gmra.mrb[0].mxu0 %v281
        %v353 = vpop.f32.mrb[0].mxu0
        %v354 = vadd.f32 0.0, %v353
        %v355 = vpop.f32.mrb[0].mxu0
        %356 = vdwg.mxu0
        %357 = vst [vmem:[%s198] sm:$0xff] %v354
        %s358 = sand.u32 %s97, 1
        %s359 = scalar_lea.sflag [#allocation4], %s358
        %s360 = sand.u32 %s97, 1
        %s361 = smul.addr %s360, 8
        %s362 = scalar_lea.vmem [#allocation7], %s361
        // Predicated region
        $region41: #{tpu_custom_call.1} parent=31 // pred_check
          %p363 = pneg %p107
        $region42: #{tpu_custom_call.1} parent=31 // pred_check_branch
          %365 = sbr.rel (%p363) target = $region44
        $region43: #{tpu_custom_call.1} parent=31 // pred_region
          %s367 = ssub.s32 128, 128
          %368 = vsyncadd %s359, %s367
          %s369 = smul.addr %s21, 128
          %s370 = scalar_lea.hbm %s3, %s369
          %s372 = sshll.u32 %s362, 4
          %s373 = int_to_ptr.vmem [resolvable:$true] %s372
          %375 = dma.vmem_to_hbm [thread:$0]  %s373, 128, %s370, %s359
        $region44: #{tpu_custom_call.1} parent=31 // pred_fallthru
          _
      $region32: #{tpu_custom_call.1} parent=5 // pred_fallthru
        _
      %p376 = scmp.le.s32.totalorder 2, %s16
      // Predicated region
      $region45: #{tpu_custom_call.1} parent=5 // pred_check
        %p377 = pneg %p376
      $region46: #{tpu_custom_call.1} parent=5 // pred_check_branch
        %379 = sbr.rel (%p377) target = $region48
      $region47: #{tpu_custom_call.1} parent=5 // pred_region
        %s380 = ssub.s32 %s16, 2
        // Predicated region
        $region49: #{tpu_custom_call.1} parent=47 // pred_check
          %p381 = pneg %p113
        $region50: #{tpu_custom_call.1} parent=47 // pred_check_branch
          %383 = sbr.rel (%p381) target = $region52
        $region51: #{tpu_custom_call.1} parent=47 // pred_region
          %s384 = sand.u32 %s98, 1
          %s385 = scalar_lea.sflag [#allocation4], %s384
          %s386 = sand.u32 %s98, 1
          %s387 = smul.addr %s386, 8
          %s388 = scalar_lea.vmem [#allocation7], %s387
          %389 = dma.done %s385, 128
        $region52: #{tpu_custom_call.1} parent=47 // pred_fallthru
          _
      $region48: #{tpu_custom_call.1} parent=5 // pred_fallthru
        _
    $region6: #{tpu_custom_call.1} parent=1 // loop_footer
      %s20 = sadd.s32 1, %s16
    $region7: #{tpu_custom_call.1} parent=1 // loop_footer_branch
      %15 = sbr.rel target = $region3
    $region8: #{tpu_custom_call.1} parent=1 // loop_exit
      _
    %390 = vsyncpa [#allocation3], 1
    %s391 = scalar_lea.sflag [#allocation3], 1
    %392 = vsyncpa %s391, 1
    %393 = vsyncpa [#allocation6], 1
    %394 = vsyncpa [#allocation4], 1
    %s395 = scalar_lea.sflag [#allocation4], 1
    %396 = vsyncpa %s395, 1

</llo_original>
